<compile_context>
chip_gen: v5e
topology: v5e:2x2
jax: 0.10.0
libtpu: 0.0.40
codegen_flags: <defaults>
</compile_context>

<pallas_src>
import functools

import jax
import jax.numpy as jnp
from jax.experimental import pallas as pl
from jax.experimental.pallas import tpu as pltpu


def _round_up(n: int, m: int) -> int:
    return ((n + m - 1) // m) * m


def _pad2(a, rows: int, cols: int):
    r, c = a.shape
    return jnp.pad(a, ((0, rows - r), (0, cols - c)))


def _make_kernel(num_hidden_layers: int):
    """Kernel closure over the (static) number of hidden layers.

    Ref order:
      x (TB, Kp) bf16, W0 (Kp, H0p) bf16, b0 (1, H0p) f32,
      [W_h (Hp_in, Hp_out) bf16, b_h (1, Hp_out) f32] * num_hidden_layers,
      Wout (Hp_last, Op) bf16, bout (1, Op) f32, out_ref (TB, Op) f32
    """

    def kernel(*refs):
        x_ref, w0_ref, b0_ref = refs[0], refs[1], refs[2]
        idx = 3

        # Fused first layer (state+move concatenated along K in the wrapper).
        x = jnp.dot(x_ref[...], w0_ref[...],
                    preferred_element_type=jnp.float32)
        x = jnp.maximum(x + b0_ref[...], 0.0)          # bias + ReLU, f32

        for _ in range(num_hidden_layers):
            w_ref = refs[idx]
            b_ref = refs[idx + 1]
            idx += 2
            x = jnp.dot(x.astype(jnp.bfloat16), w_ref[...],
                        preferred_element_type=jnp.float32)
            x = jnp.maximum(x + b_ref[...], 0.0)

        wo_ref = refs[idx]
        bo_ref = refs[idx + 1]
        out_ref = refs[idx + 2]

        logits = jnp.dot(x.astype(jnp.bfloat16), wo_ref[...],
                         preferred_element_type=jnp.float32)
        out_ref[...] = jax.nn.sigmoid(logits + bo_ref[...])

    return kernel


def matrix_nn_forward(state, move, params, *, batch_tile=256, feature_pad=128):
    """Pallas forward.  `params` is a dict with:
         Ws:(M,H0)  Wm:(M,H0)  b0:(1,H0)
         hidden: list of (W:(Hi,Hi+1), b:(1,Hi+1))
         Wout:(H_last,O)  bout:(1,O)
    """
    B, M = state.shape
    H0 = params["Ws"].shape[1]
    O = params["Wout"].shape[1]
    num_hidden = len(params["hidden"])

    # ---- Fuse first layer: one matmul over the concatenated input -------
    x_in = jnp.concatenate([state, move], axis=1)                 # (B, 2M)
    w0 = jnp.concatenate([params["Ws"], params["Wm"]], axis=0)    # (2M, H0)

    # ---- Padding to lane-friendly sizes ----------------------------------
    K = 2 * M
    Kp = _round_up(K, feature_pad)
    H0p = _round_up(H0, feature_pad)
    Op = _round_up(O, feature_pad)

    # Batch tile: multiple of 8; small batches fit in a single grid step.
    if B <= batch_tile:
        TB = max(8, _round_up(B, 8))
    else:
        TB = batch_tile
    Bp = _round_up(B, TB)
    grid = (Bp // TB,)

    # ---- Prepare operands: pad once, cast matmul operands to bf16 --------
    x_pad = _pad2(x_in, Bp, Kp).astype(jnp.bfloat16)
    w0_pad = _pad2(w0, Kp, H0p).astype(jnp.bfloat16)
    b0_pad = _pad2(params["b0"], 1, H0p).astype(jnp.float32)

    flat_inputs = [x_pad, w0_pad, b0_pad]
    in_specs = [
        pl.BlockSpec((TB, Kp), lambda i: (i, 0)),
        pl.BlockSpec((Kp, H0p), lambda i: (0, 0)),
        pl.BlockSpec((1, H0p), lambda i: (0, 0)),
    ]

    prev_p = H0p
    for (w, b) in params["hidden"]:
        hi, ho = w.shape
        hop = _round_up(ho, feature_pad)
        w_pad = _pad2(w, prev_p, hop).astype(jnp.bfloat16)
        b_pad = _pad2(b, 1, hop).astype(jnp.float32)
        flat_inputs.extend([w_pad, b_pad])
        in_specs.append(pl.BlockSpec((prev_p, hop), lambda i: (0, 0)))
        in_specs.append(pl.BlockSpec((1, hop), lambda i: (0, 0)))
        prev_p = hop

    wo_pad = _pad2(params["Wout"], prev_p, Op).astype(jnp.bfloat16)
    bo_pad = _pad2(params["bout"], 1, Op).astype(jnp.float32)
    flat_inputs.extend([wo_pad, bo_pad])
    in_specs.append(pl.BlockSpec((prev_p, Op), lambda i: (0, 0)))
    in_specs.append(pl.BlockSpec((1, Op), lambda i: (0, 0)))

    kernel = _make_kernel(num_hidden)

    out_padded = pl.pallas_call(
        kernel,
        out_shape=jax.ShapeDtypeStruct((Bp, Op), jnp.float32),
        grid=grid,
        in_specs=in_specs,
        out_specs=pl.BlockSpec((TB, Op), lambda i: (i, 0)),
        compiler_params=pltpu.CompilerParams(
            dimension_semantics=("parallel",)),
    )(*flat_inputs)

    return out_padded[:B, :O]


# jit the whole wrapper so padding/concat/cast fuse with the surrounding graph.
matrix_nn_forward_jit = jax.jit(
    matrix_nn_forward, static_argnames=("batch_tile", "feature_pad"))


def init_params(key, input_size, layer_dims, output_size):
    """Deterministic synthetic init (PyTorch-style uniform fan-in scaling)."""
    keys = jax.random.split(key, 4 + 2 * len(layer_dims))
    ki = iter(range(len(keys)))

    def lin(k, fan_in, fan_out, shape=None):
        bound = 1.0 / jnp.sqrt(jnp.float32(fan_in))
        shape = shape if shape is not None else (fan_in, fan_out)
        return jax.random.uniform(k, shape, jnp.float32, -bound, bound)

    M = input_size
    H0 = layer_dims[0]
    params = {}
    params["Ws"] = lin(keys[next(ki)], M, H0)
    params["Wm"] = lin(keys[next(ki)], M, H0)                 # first_move: no bias
    params["b0"] = lin(keys[next(ki)], M, H0, shape=(1, H0))  # fan_in-scaled bias

    hidden = []
    for a, b in zip(layer_dims, layer_dims[1:]):
        w = lin(keys[next(ki)], a, b)
        bb = lin(keys[next(ki)], a, b, shape=(1, b))
        hidden.append((w, bb))
    params["hidden"] = hidden

    params["Wout"] = lin(keys[next(ki)], layer_dims[-1], output_size)
    params["bout"] = lin(keys[next(ki)], layer_dims[-1], output_size,
                         shape=(1, output_size))
    return params


def reference_forward(state, move, params):
    """Pure-JAX f32 reference matching the PyTorch module semantics."""
    x = state @ params["Ws"] + params["b0"] + move @ params["Wm"]
    x = jnp.maximum(x, 0.0)
    for (w, b) in params["hidden"]:
        x = jnp.maximum(x @ w + b, 0.0)
    return jax.nn.sigmoid(x @ params["Wout"] + params["bout"])


if __name__ == "__main__":
    # Shapes consistent with the module's forward: state/move: (batch, M).
    batch = 256              # batched boards amortize dispatch/DMA overhead
    input_size = 16          # M
    layer_dims = [32, 32]    # first layer width + one hidden layer
    output_size = 4

    key = jax.random.PRNGKey(0)
    k_state, k_move, k_params = jax.random.split(key, 3)

    state = jax.random.normal(k_state, (batch, input_size), jnp.float32)
    move = jax.random.normal(k_move, (batch, input_size), jnp.float32)
    params = init_params(k_params, input_size, layer_dims, output_size)

    out = matrix_nn_forward_jit(state, move, params)
    out = jax.block_until_ready(out)

    ref = jax.block_until_ready(reference_forward(state, move, params))
    assert out.shape == (batch, output_size), out.shape
    # Matmul operands are bf16 (f32 accumulation); sigmoid output in [0,1],
    # so a modest absolute tolerance vs. the f32 reference is appropriate.
    assert jnp.allclose(out, ref, atol=2e-2, rtol=0.0), "mismatch vs reference"

    print("KERNEL_OK")
</pallas_src>

<mosaic_0001>
module attributes {stable_mosaic.version = 11 : i64} {
  func.func @kernel(%arg0: i32, %arg1: memref<256x128xbf16, #tpu.memory_space<vmem>>, %arg2: memref<128x128xbf16, #tpu.memory_space<vmem>>, %arg3: memref<1x128xf32, #tpu.memory_space<vmem>>, %arg4: memref<128x128xbf16, #tpu.memory_space<vmem>>, %arg5: memref<1x128xf32, #tpu.memory_space<vmem>>, %arg6: memref<128x128xbf16, #tpu.memory_space<vmem>>, %arg7: memref<1x128xf32, #tpu.memory_space<vmem>>, %arg8: memref<256x128xf32, #tpu.memory_space<vmem>>) attributes {dimension_semantics = [#tpu.dimension_semantics<parallel>], iteration_bounds = array<i64: 1>, scalar_prefetch = 0 : i64, scratch_operands = 0 : i64, tpu.core_type = #tpu.core_type<tc>, window_params = [{transform_indices = @transform_0, window_bounds = array<i64: 256, 128>}, {pipeline_mode = #tpu.pipeline_mode<synchronous>, transform_indices = @transform_1, window_bounds = array<i64: 128, 128>}, {pipeline_mode = #tpu.pipeline_mode<synchronous>, transform_indices = @transform_2, window_bounds = array<i64: 1, 128>}, {pipeline_mode = #tpu.pipeline_mode<synchronous>, transform_indices = @transform_3, window_bounds = array<i64: 128, 128>}, {pipeline_mode = #tpu.pipeline_mode<synchronous>, transform_indices = @transform_4, window_bounds = array<i64: 1, 128>}, {pipeline_mode = #tpu.pipeline_mode<synchronous>, transform_indices = @transform_5, window_bounds = array<i64: 128, 128>}, {pipeline_mode = #tpu.pipeline_mode<synchronous>, transform_indices = @transform_6, window_bounds = array<i64: 1, 128>}, {transform_indices = @transform_7, window_bounds = array<i64: 256, 128>}]} {
    %c0 = arith.constant 0 : index
    %c0_0 = arith.constant 0 : index
    %0 = vector.load %arg1[%c0, %c0_0] : memref<256x128xbf16, #tpu.memory_space<vmem>>, vector<256x128xbf16>
    %c0_1 = arith.constant 0 : index
    %c0_2 = arith.constant 0 : index
    %1 = vector.load %arg2[%c0_1, %c0_2] : memref<128x128xbf16, #tpu.memory_space<vmem>>, vector<128x128xbf16>
    %cst = arith.constant dense<0.000000e+00> : vector<256x128xf32>
    %2 = tpu.matmul %0, %1, %cst {dimension_numbers = #tpu.dot_dimension_numbers<[1], [0], [0], [1], [0, 0, 1, 1], [], []>} : vector<256x128xbf16>, vector<128x128xbf16>, vector<256x128xf32> -> vector<256x128xf32>
    %c0_3 = arith.constant 0 : index
    %c0_4 = arith.constant 0 : index
    %3 = vector.load %arg3[%c0_3, %c0_4] : memref<1x128xf32, #tpu.memory_space<vmem>>, vector<1x128xf32>
    %4 = vector.broadcast %3 : vector<1x128xf32> to vector<256x128xf32>
    %5 = arith.addf %2, %4 : vector<256x128xf32>
    %cst_5 = arith.constant 0.000000e+00 : f32
    %6 = vector.broadcast %cst_5 : f32 to vector<256x128xf32>
    %7 = arith.maximumf %5, %6 : vector<256x128xf32>
    %8 = arith.truncf %7 : vector<256x128xf32> to vector<256x128xbf16>
    %c0_6 = arith.constant 0 : index
    %c0_7 = arith.constant 0 : index
    %9 = vector.load %arg4[%c0_6, %c0_7] : memref<128x128xbf16, #tpu.memory_space<vmem>>, vector<128x128xbf16>
    %cst_8 = arith.constant dense<0.000000e+00> : vector<256x128xf32>
    %10 = tpu.matmul %8, %9, %cst_8 {dimension_numbers = #tpu.dot_dimension_numbers<[1], [0], [0], [1], [0, 0, 1, 1], [], []>} : vector<256x128xbf16>, vector<128x128xbf16>, vector<256x128xf32> -> vector<256x128xf32>
    %c0_9 = arith.constant 0 : index
    %c0_10 = arith.constant 0 : index
    %11 = vector.load %arg5[%c0_9, %c0_10] : memref<1x128xf32, #tpu.memory_space<vmem>>, vector<1x128xf32>
    %12 = vector.broadcast %11 : vector<1x128xf32> to vector<256x128xf32>
    %13 = arith.addf %10, %12 : vector<256x128xf32>
    %cst_11 = arith.constant 0.000000e+00 : f32
    %14 = vector.broadcast %cst_11 : f32 to vector<256x128xf32>
    %15 = arith.maximumf %13, %14 : vector<256x128xf32>
    %16 = arith.truncf %15 : vector<256x128xf32> to vector<256x128xbf16>
    %c0_12 = arith.constant 0 : index
    %c0_13 = arith.constant 0 : index
    %17 = vector.load %arg6[%c0_12, %c0_13] : memref<128x128xbf16, #tpu.memory_space<vmem>>, vector<128x128xbf16>
    %cst_14 = arith.constant dense<0.000000e+00> : vector<256x128xf32>
    %18 = tpu.matmul %16, %17, %cst_14 {dimension_numbers = #tpu.dot_dimension_numbers<[1], [0], [0], [1], [0, 0, 1, 1], [], []>} : vector<256x128xbf16>, vector<128x128xbf16>, vector<256x128xf32> -> vector<256x128xf32>
    %c0_15 = arith.constant 0 : index
    %c0_16 = arith.constant 0 : index
    %19 = vector.load %arg7[%c0_15, %c0_16] : memref<1x128xf32, #tpu.memory_space<vmem>>, vector<1x128xf32>
    %20 = vector.broadcast %19 : vector<1x128xf32> to vector<256x128xf32>
    %21 = arith.addf %18, %20 : vector<256x128xf32>
    %22 = arith.negf %21 : vector<256x128xf32>
    %23 = math.exp %22 : vector<256x128xf32>
    %cst_17 = arith.constant 1.000000e+00 : f32
    %24 = vector.broadcast %cst_17 : f32 to vector<256x128xf32>
    %25 = arith.addf %24, %23 : vector<256x128xf32>
    %26 = arith.divf %24, %25 : vector<256x128xf32>
    %c0_18 = arith.constant 0 : index
    %c0_19 = arith.constant 0 : index
    %27 = vector.load %arg8[%c0_18, %c0_19] : memref<256x128xf32, #tpu.memory_space<vmem>>, vector<256x128xf32>
    tpu.vector_store %arg8[%c0_18, %c0_19], %26 {strides = array<i32>} : memref<256x128xf32, #tpu.memory_space<vmem>>, vector<256x128xf32>,
    return
  }
  func.func @transform_0(%arg0: i32) -> (i32, i32) {
    %c0_i32 = arith.constant 0 : i32
    %c0_i32_0 = arith.constant 0 : i32
    return %arg0, %c0_i32 : i32, i32
  }
  func.func @transform_1(%arg0: i32) -> (i32, i32) {
    %c0_i32 = arith.constant 0 : i32
    %c0_i32_0 = arith.constant 0 : i32
    %c0_i32_1 = arith.constant 0 : i32
    return %c0_i32, %c0_i32_0 : i32, i32
  }
  func.func @transform_2(%arg0: i32) -> (i32, i32) {
    %c0_i32 = arith.constant 0 : i32
    %c0_i32_0 = arith.constant 0 : i32
    %c0_i32_1 = arith.constant 0 : i32
    return %c0_i32, %c0_i32_0 : i32, i32
  }
  func.func @transform_3(%arg0: i32) -> (i32, i32) {
    %c0_i32 = arith.constant 0 : i32
    %c0_i32_0 = arith.constant 0 : i32
    %c0_i32_1 = arith.constant 0 : i32
    return %c0_i32, %c0_i32_0 : i32, i32
  }
  func.func @transform_4(%arg0: i32) -> (i32, i32) {
    %c0_i32 = arith.constant 0 : i32
    %c0_i32_0 = arith.constant 0 : i32
    %c0_i32_1 = arith.constant 0 : i32
    return %c0_i32, %c0_i32_0 : i32, i32
  }
  func.func @transform_5(%arg0: i32) -> (i32, i32) {
    %c0_i32 = arith.constant 0 : i32
    %c0_i32_0 = arith.constant 0 : i32
    %c0_i32_1 = arith.constant 0 : i32
    return %c0_i32, %c0_i32_0 : i32, i32
  }
  func.func @transform_6(%arg0: i32) -> (i32, i32) {
    %c0_i32 = arith.constant 0 : i32
    %c0_i32_0 = arith.constant 0 : i32
    %c0_i32_1 = arith.constant 0 : i32
    return %c0_i32, %c0_i32_0 : i32, i32
  }
  func.func @transform_7(%arg0: i32) -> (i32, i32) {
    %c0_i32 = arith.constant 0 : i32
    %c0_i32_0 = arith.constant 0 : i32
    return %arg0, %c0_i32 : i32, i32
  }
}

</mosaic_0001>

<llo_original>
// kernel: matrix_nn_forward.1
$region0: #{matrix_nn_forward.1}
  #allocation0 [shape = 'u32[]', space=smem, size = 0x4, offset = 0x4, fixed_abs, tag = 'smem constant byte address 0x4 - core index']
  #allocation1 [shape = 'u32[72,128]{1,0:T(1,128)}', space=vmem, size = 0x9000, scoped, tag = 'internal scratch']
  %s0 = inlined_call_operand.vmem [shape: bf16[256,128], index: 0, kind: input, shape index: {}]
  %s1 = inlined_call_operand.vmem [shape: bf16[128,128], index: 1, kind: input, shape index: {}]
  %s2 = inlined_call_operand.vmem [shape: f32[1,128], index: 2, kind: input, shape index: {}]
  %s3 = inlined_call_operand.vmem [shape: bf16[128,128], index: 3, kind: input, shape index: {}]
  %s4 = inlined_call_operand.vmem [shape: f32[1,128], index: 4, kind: input, shape index: {}]
  %s5 = inlined_call_operand.vmem [shape: bf16[128,128], index: 5, kind: input, shape index: {}]
  %s6 = inlined_call_operand.vmem [shape: f32[1,128], index: 6, kind: input, shape index: {}]
  %s7 = inlined_call_operand.vmem [shape: f32[256,128], index: 7, kind: output, shape index: {}]
  %s8 = sld [smem:[#allocation0]]
  $region38: #{matrix_nn_forward.1} parent=0
    _
  %s10 = ssub.s32 1, %s8
  %s11 = scalar_select 0, %s10, %s8
  // Predicated region
  $region2: #{matrix_nn_forward.1} parent=0 // pred_check
    _
  $region3: #{matrix_nn_forward.1} parent=0 // pred_check_branch
    %13 = sbr.rel (0) target = $region5
  $region4: #{matrix_nn_forward.1} parent=0 // pred_region
    _
  $region5: #{matrix_nn_forward.1} parent=0 // pred_fallthru
    _
  // Predicated region
  $region6: #{matrix_nn_forward.1} parent=0 // pred_check
    _
  $region7: #{matrix_nn_forward.1} parent=0 // pred_check_branch
    %15 = sbr.rel (0) target = $region9
  $region8: #{matrix_nn_forward.1} parent=0 // pred_region
    _
  $region9: #{matrix_nn_forward.1} parent=0 // pred_fallthru
    _
  // Predicated region
  $region10: #{matrix_nn_forward.1} parent=0 // pred_check
    _
  $region11: #{matrix_nn_forward.1} parent=0 // pred_check_branch
    %17 = sbr.rel (0) target = $region13
  $region12: #{matrix_nn_forward.1} parent=0 // pred_region
    _
  $region13: #{matrix_nn_forward.1} parent=0 // pred_fallthru
    _
  // Predicated region
  $region14: #{matrix_nn_forward.1} parent=0 // pred_check
    _
  $region15: #{matrix_nn_forward.1} parent=0 // pred_check_branch
    %19 = sbr.rel (0) target = $region17
  $region16: #{matrix_nn_forward.1} parent=0 // pred_region
    _
  $region17: #{matrix_nn_forward.1} parent=0 // pred_fallthru
    _
  // Predicated region
  $region18: #{matrix_nn_forward.1} parent=0 // pred_check
    _
  $region19: #{matrix_nn_forward.1} parent=0 // pred_check_branch
    %21 = sbr.rel (0) target = $region21
  $region20: #{matrix_nn_forward.1} parent=0 // pred_region
    _
  $region21: #{matrix_nn_forward.1} parent=0 // pred_fallthru
    _
  // Predicated region
  $region22: #{matrix_nn_forward.1} parent=0 // pred_check
    _
  $region23: #{matrix_nn_forward.1} parent=0 // pred_check_branch
    %23 = sbr.rel (0) target = $region25
  $region24: #{matrix_nn_forward.1} parent=0 // pred_region
    _
  $region25: #{matrix_nn_forward.1} parent=0 // pred_fallthru
    _
  // Predicated region
  $region26: #{matrix_nn_forward.1} parent=0 // pred_check
    _
  $region27: #{matrix_nn_forward.1} parent=0 // pred_check_branch
    %25 = sbr.rel (0) target = $region29
  $region28: #{matrix_nn_forward.1} parent=0 // pred_region
    _
  $region29: #{matrix_nn_forward.1} parent=0 // pred_fallthru
    _
  %v26 = vld [vmem:[%s0] sm:$0xf]
  %v27 = vld [vmem:[%s0 + $0x4] sm:$0xf]
  %v28 = vld [vmem:[%s0 + $0x8] sm:$0xf]
  %v29 = vld [vmem:[%s0 + $0xc] sm:$0xf]
  %v30 = vld [vmem:[%s0 + $0x10] sm:$0xf]
  %v31 = vld [vmem:[%s0 + $0x14] sm:$0xf]
  %v32 = vld [vmem:[%s0 + $0x18] sm:$0xf]
  %v33 = vld [vmem:[%s0 + $0x1c] sm:$0xf]
  %v34 = vld [vmem:[%s0 + $0x20] sm:$0xf]
  %v35 = vld [vmem:[%s0 + $0x24] sm:$0xf]
  %v36 = vld [vmem:[%s0 + $0x28] sm:$0xf]
  %v37 = vld [vmem:[%s0 + $0x2c] sm:$0xf]
  %v38 = vld [vmem:[%s0 + $0x30] sm:$0xf]
  %v39 = vld [vmem:[%s0 + $0x34] sm:$0xf]
  %v40 = vld [vmem:[%s0 + $0x38] sm:$0xf]
  %v41 = vld [vmem:[%s0 + $0x3c] sm:$0xf]
  %v42 = vld [vmem:[%s0 + $0x40] sm:$0xf]
  %v43 = vld [vmem:[%s0 + $0x44] sm:$0xf]
  %v44 = vld [vmem:[%s0 + $0x48] sm:$0xf]
  %v45 = vld [vmem:[%s0 + $0x4c] sm:$0xf]
  %v46 = vld [vmem:[%s0 + $0x50] sm:$0xf]
  %v47 = vld [vmem:[%s0 + $0x54] sm:$0xf]
  %v48 = vld [vmem:[%s0 + $0x58] sm:$0xf]
  %v49 = vld [vmem:[%s0 + $0x5c] sm:$0xf]
  %v50 = vld [vmem:[%s0 + $0x60] sm:$0xf]
  %v51 = vld [vmem:[%s0 + $0x64] sm:$0xf]
  %v52 = vld [vmem:[%s0 + $0x68] sm:$0xf]
  %v53 = vld [vmem:[%s0 + $0x6c] sm:$0xf]
  %v54 = vld [vmem:[%s0 + $0x70] sm:$0xf]
  %v55 = vld [vmem:[%s0 + $0x74] sm:$0xf]
  %v56 = vld [vmem:[%s0 + $0x78] sm:$0xf]
  %v57 = vld [vmem:[%s0 + $0x7c] sm:$0xf]
  %v58 = vld [vmem:[%s1] sm:$0xf]
  %v59 = vld [vmem:[%s1 + $0x4] sm:$0xf]
  %v60 = vld [vmem:[%s1 + $0x8] sm:$0xf]
  %v61 = vld [vmem:[%s1 + $0xc] sm:$0xf]
  %v62 = vld [vmem:[%s1 + $0x10] sm:$0xf]
  %v63 = vld [vmem:[%s1 + $0x14] sm:$0xf]
  %v64 = vld [vmem:[%s1 + $0x18] sm:$0xf]
  %v65 = vld [vmem:[%s1 + $0x1c] sm:$0xf]
  %v66 = vld [vmem:[%s1 + $0x20] sm:$0xf]
  %v67 = vld [vmem:[%s1 + $0x24] sm:$0xf]
  %v68 = vld [vmem:[%s1 + $0x28] sm:$0xf]
  %v69 = vld [vmem:[%s1 + $0x2c] sm:$0xf]
  %v70 = vld [vmem:[%s1 + $0x30] sm:$0xf]
  %v71 = vld [vmem:[%s1 + $0x34] sm:$0xf]
  %v72 = vld [vmem:[%s1 + $0x38] sm:$0xf]
  %v73 = vld [vmem:[%s1 + $0x3c] sm:$0xf]
  %v74 = vld [vmem:[%s2] sm:$0x1]
  %v76 = vperm.slane %v74, 0
  %v110 = vunpack.c.l.b16 %v26
  %v111 = vunpack.c.l.b16 %v27
  %v112 = vunpack.c.l.b16 %v28
  %v113 = vunpack.c.l.b16 %v29
  %v114 = vunpack.c.l.b16 %v30
  %v115 = vunpack.c.l.b16 %v31
  %v116 = vunpack.c.l.b16 %v32
  %v117 = vunpack.c.l.b16 %v33
  %v118 = vunpack.c.l.b16 %v34
  %v119 = vunpack.c.l.b16 %v35
  %v120 = vunpack.c.l.b16 %v36
  %v121 = vunpack.c.l.b16 %v37
  %v122 = vunpack.c.l.b16 %v38
  %v123 = vunpack.c.l.b16 %v39
  %v124 = vunpack.c.l.b16 %v40
  %v125 = vunpack.c.l.b16 %v41
  %v126 = vunpack.c.l.b16 %v42
  %v127 = vunpack.c.l.b16 %v43
  %v128 = vunpack.c.l.b16 %v44
  %v129 = vunpack.c.l.b16 %v45
  %v130 = vunpack.c.l.b16 %v46
  %v131 = vunpack.c.l.b16 %v47
  %v132 = vunpack.c.l.b16 %v48
  %v133 = vunpack.c.l.b16 %v49
  %v134 = vunpack.c.l.b16 %v50
  %v135 = vunpack.c.l.b16 %v51
  %v136 = vunpack.c.l.b16 %v52
  %v137 = vunpack.c.l.b16 %v53
  %v138 = vunpack.c.l.b16 %v54
  %v139 = vunpack.c.l.b16 %v55
  %v140 = vunpack.c.l.b16 %v56
  %v141 = vunpack.c.l.b16 %v57
  %v142 = vpack.c.b16 %v111, %v110
  %v143 = vpack.c.b16 %v113, %v112
  %v144 = vpack.c.b16 %v115, %v114
  %v145 = vpack.c.b16 %v117, %v116
  %v146 = vpack.c.b16 %v119, %v118
  %v147 = vpack.c.b16 %v121, %v120
  %v148 = vpack.c.b16 %v123, %v122
  %v149 = vpack.c.b16 %v125, %v124
  %v150 = vpack.c.b16 %v127, %v126
  %v151 = vpack.c.b16 %v129, %v128
  %v152 = vpack.c.b16 %v131, %v130
  %v153 = vpack.c.b16 %v133, %v132
  %v154 = vpack.c.b16 %v135, %v134
  %v155 = vpack.c.b16 %v137, %v136
  %v156 = vpack.c.b16 %v139, %v138
  %v157 = vpack.c.b16 %v141, %v140
  %v190 = vunpack.c.l.b16 %v58
  %v191 = vunpack.c.l.b16 %v59
  %v192 = vunpack.c.l.b16 %v60
  %v193 = vunpack.c.l.b16 %v61
  %v194 = vunpack.c.l.b16 %v62
  %v195 = vunpack.c.l.b16 %v63
  %v196 = vunpack.c.l.b16 %v64
  %v197 = vunpack.c.l.b16 %v65
  %v198 = vunpack.c.l.b16 %v66
  %v199 = vunpack.c.l.b16 %v67
  %v200 = vunpack.c.l.b16 %v68
  %v201 = vunpack.c.l.b16 %v69
  %v202 = vunpack.c.l.b16 %v70
  %v203 = vunpack.c.l.b16 %v71
  %v204 = vunpack.c.l.b16 %v72
  %v205 = vunpack.c.l.b16 %v73
  %v206 = vpack.c.b16 %v191, %v190
  %v207 = vpack.c.b16 %v193, %v192
  %v208 = vpack.c.b16 %v195, %v194
  %v209 = vpack.c.b16 %v197, %v196
  %v210 = vpack.c.b16 %v199, %v198
  %v211 = vpack.c.b16 %v201, %v200
  %v212 = vpack.c.b16 %v203, %v202
  %v213 = vpack.c.b16 %v205, %v204
  %222 = vmatpush.bf16.msra.mxu0 %v213
  %223 = vmatpush.bf16.msra.mxu0 %v212
  %224 = vmatpush.bf16.msra.mxu0 %v211
  %225 = vmatpush.bf16.msra.mxu0 %v210
  %226 = vmatpush.bf16.msra.mxu0 %v209
  %227 = vmatpush.bf16.msra.mxu0 %v208
  %228 = vmatpush.bf16.msra.mxu0 %v207
  %229 = vmatpush.bf16.msra.mxu0 %v206
  %230 = vmatmul.bf16.gmra.mxu0 %v142
  %v231 = vpop.f32.mrf.mxu0
  %v232 = vadd.f32 %v76, %v231
  %v233 = vpop.f32.mrf.mxu0
  %v234 = vadd.f32 %v76, %v233
  %235 = vmatmul.bf16.gmra.mxu0 %v143
  %v236 = vpop.f32.mrf.mxu0
  %v237 = vadd.f32 %v76, %v236
  %v238 = vpop.f32.mrf.mxu0
  %v239 = vadd.f32 %v76, %v238
  %240 = vmatmul.bf16.gmra.mxu0 %v144
  %v241 = vpop.f32.mrf.mxu0
  %v242 = vadd.f32 %v76, %v241
  %v243 = vpop.f32.mrf.mxu0
  %v244 = vadd.f32 %v76, %v243
  %245 = vmatmul.bf16.gmra.mxu0 %v145
  %v246 = vpop.f32.mrf.mxu0
  %v247 = vadd.f32 %v76, %v246
  %v248 = vpop.f32.mrf.mxu0
  %v249 = vadd.f32 %v76, %v248
  %250 = vmatmul.bf16.gmra.mxu0 %v146
  %v251 = vpop.f32.mrf.mxu0
  %v252 = vadd.f32 %v76, %v251
  %v253 = vpop.f32.mrf.mxu0
  %v254 = vadd.f32 %v76, %v253
  %255 = vmatmul.bf16.gmra.mxu0 %v147
  %v256 = vpop.f32.mrf.mxu0
  %v257 = vadd.f32 %v76, %v256
  %v258 = vpop.f32.mrf.mxu0
  %v259 = vadd.f32 %v76, %v258
  %260 = vmatmul.bf16.gmra.mxu0 %v148
  %v261 = vpop.f32.mrf.mxu0
  %v262 = vadd.f32 %v76, %v261
  %v263 = vpop.f32.mrf.mxu0
  %v264 = vadd.f32 %v76, %v263
  %265 = vmatmul.bf16.gmra.mxu0 %v149
  %v266 = vpop.f32.mrf.mxu0
  %v267 = vadd.f32 %v76, %v266
  %v268 = vpop.f32.mrf.mxu0
  %v269 = vadd.f32 %v76, %v268
  %270 = vmatmul.bf16.gmra.mxu0 %v150
  %v271 = vpop.f32.mrf.mxu0
  %v272 = vadd.f32 %v76, %v271
  %v273 = vpop.f32.mrf.mxu0
  %v274 = vadd.f32 %v76, %v273
  %275 = vmatmul.bf16.gmra.mxu0 %v151
  %v276 = vpop.f32.mrf.mxu0
  %v277 = vadd.f32 %v76, %v276
  %v278 = vpop.f32.mrf.mxu0
  %v279 = vadd.f32 %v76, %v278
  %280 = vmatmul.bf16.gmra.mxu0 %v152
  %v281 = vpop.f32.mrf.mxu0
  %v282 = vadd.f32 %v76, %v281
  %v283 = vpop.f32.mrf.mxu0
  %v284 = vadd.f32 %v76, %v283
  %285 = vmatmul.bf16.gmra.mxu0 %v153
  %v286 = vpop.f32.mrf.mxu0
  %v287 = vadd.f32 %v76, %v286
  %v288 = vpop.f32.mrf.mxu0
  %v289 = vadd.f32 %v76, %v288
  %290 = vmatmul.bf16.gmra.mxu0 %v154
  %v291 = vpop.f32.mrf.mxu0
  %v292 = vadd.f32 %v76, %v291
  %v293 = vpop.f32.mrf.mxu0
  %v294 = vadd.f32 %v76, %v293
  %295 = vmatmul.bf16.gmra.mxu0 %v155
  %v296 = vpop.f32.mrf.mxu0
  %v297 = vadd.f32 %v76, %v296
  %v298 = vpop.f32.mrf.mxu0
  %v299 = vadd.f32 %v76, %v298
  %300 = vmatmul.bf16.gmra.mxu0 %v156
  %v301 = vpop.f32.mrf.mxu0
  %v302 = vadd.f32 %v76, %v301
  %v303 = vpop.f32.mrf.mxu0
  %v304 = vadd.f32 %v76, %v303
  %305 = vmatmul.bf16.gmra.mxu0 %v157
  %v306 = vpop.f32.mrf.mxu0
  %v307 = vadd.f32 %v76, %v306
  %v308 = vpop.f32.mrf.mxu0
  %v309 = vadd.f32 %v76, %v308
  %310 = vdwg.mxu0
  %v311 = vmax.f32 %v232, 0.0
  %v312 = vmax.f32 %v234, 0.0
  %v313 = vmax.f32 %v237, 0.0
  %v314 = vmax.f32 %v239, 0.0
  %v315 = vmax.f32 %v242, 0.0
  %v316 = vmax.f32 %v244, 0.0
  %v317 = vmax.f32 %v247, 0.0
  %v318 = vmax.f32 %v249, 0.0
  %v319 = vmax.f32 %v252, 0.0
  %v320 = vmax.f32 %v254, 0.0
  %v321 = vmax.f32 %v257, 0.0
  %v322 = vmax.f32 %v259, 0.0
  %v323 = vmax.f32 %v262, 0.0
  %v324 = vmax.f32 %v264, 0.0
  %v325 = vmax.f32 %v267, 0.0
  %v326 = vmax.f32 %v269, 0.0
  %v327 = vmax.f32 %v272, 0.0
  %v328 = vmax.f32 %v274, 0.0
  %v329 = vmax.f32 %v277, 0.0
  %v330 = vmax.f32 %v279, 0.0
  %v331 = vmax.f32 %v282, 0.0
  %v332 = vmax.f32 %v284, 0.0
  %v333 = vmax.f32 %v287, 0.0
  %v334 = vmax.f32 %v289, 0.0
  %v335 = vmax.f32 %v292, 0.0
  %v336 = vmax.f32 %v294, 0.0
  %v337 = vmax.f32 %v297, 0.0
  %v338 = vmax.f32 %v299, 0.0
  %v339 = vmax.f32 %v302, 0.0
  %v340 = vmax.f32 %v304, 0.0
  %v341 = vmax.f32 %v307, 0.0
  %v342 = vmax.f32 %v309, 0.0
  %v343 = vpack.c.bf16 %v312, %v311
  %v344 = vpack.c.bf16 %v314, %v313
  %v345 = vpack.c.bf16 %v316, %v315
  %v346 = vpack.c.bf16 %v318, %v317
  %v347 = vpack.c.bf16 %v320, %v319
  %v348 = vpack.c.bf16 %v322, %v321
  %v349 = vpack.c.bf16 %v324, %v323
  %v350 = vpack.c.bf16 %v326, %v325
  %v351 = vpack.c.bf16 %v328, %v327
  %v352 = vpack.c.bf16 %v330, %v329
  %v353 = vpack.c.bf16 %v332, %v331
  %v354 = vpack.c.bf16 %v334, %v333
  %v355 = vpack.c.bf16 %v336, %v335
  %v356 = vpack.c.bf16 %v338, %v337
  %v357 = vpack.c.bf16 %v340, %v339
  %v358 = vpack.c.bf16 %v342, %v341
  %v359 = vld [vmem:[%s3] sm:$0xf]
  %v360 = vld [vmem:[%s3 + $0x4] sm:$0xf]
  %v361 = vld [vmem:[%s3 + $0x8] sm:$0xf]
  %v362 = vld [vmem:[%s3 + $0xc] sm:$0xf]
  %v363 = vld [vmem:[%s3 + $0x10] sm:$0xf]
  %v364 = vld [vmem:[%s3 + $0x14] sm:$0xf]
  %v365 = vld [vmem:[%s3 + $0x18] sm:$0xf]
  %v366 = vld [vmem:[%s3 + $0x1c] sm:$0xf]
  %v367 = vld [vmem:[%s3 + $0x20] sm:$0xf]
  %v368 = vld [vmem:[%s3 + $0x24] sm:$0xf]
  %v369 = vld [vmem:[%s3 + $0x28] sm:$0xf]
  %v370 = vld [vmem:[%s3 + $0x2c] sm:$0xf]
  %v371 = vld [vmem:[%s3 + $0x30] sm:$0xf]
  %v372 = vld [vmem:[%s3 + $0x34] sm:$0xf]
  %v373 = vld [vmem:[%s3 + $0x38] sm:$0xf]
  %v374 = vld [vmem:[%s3 + $0x3c] sm:$0xf]
  %v375 = vld [vmem:[%s4] sm:$0x1]
  %v377 = vperm.slane %v375, 0
  %v395 = vunpack.c.l.b16 %v359
  %v396 = vunpack.c.l.b16 %v360
  %v397 = vunpack.c.l.b16 %v361
  %v398 = vunpack.c.l.b16 %v362
  %v399 = vunpack.c.l.b16 %v363
  %v400 = vunpack.c.l.b16 %v364
  %v401 = vunpack.c.l.b16 %v365
  %v402 = vunpack.c.l.b16 %v366
  %v403 = vunpack.c.l.b16 %v367
  %v404 = vunpack.c.l.b16 %v368
  %v405 = vunpack.c.l.b16 %v369
  %v406 = vunpack.c.l.b16 %v370
  %v407 = vunpack.c.l.b16 %v371
  %v408 = vunpack.c.l.b16 %v372
  %v409 = vunpack.c.l.b16 %v373
  %v410 = vunpack.c.l.b16 %v374
  %v411 = vpack.c.b16 %v396, %v395
  %v412 = vpack.c.b16 %v398, %v397
  %v413 = vpack.c.b16 %v400, %v399
  %v414 = vpack.c.b16 %v402, %v401
  %v415 = vpack.c.b16 %v404, %v403
  %v416 = vpack.c.b16 %v406, %v405
  %v417 = vpack.c.b16 %v408, %v407
  %v418 = vpack.c.b16 %v410, %v409
  %427 = vmatpush.bf16.msra.mxu0 %v418
  %428 = vmatpush.bf16.msra.mxu0 %v417
  %429 = vmatpush.bf16.msra.mxu0 %v416
  %430 = vmatpush.bf16.msra.mxu0 %v415
  %431 = vmatpush.bf16.msra.mxu0 %v414
  %432 = vmatpush.bf16.msra.mxu0 %v413
  %433 = vmatpush.bf16.msra.mxu0 %v412
  %434 = vmatpush.bf16.msra.mxu0 %v411
  %435 = vmatmul.bf16.gmra.mxu0 %v343
  %v436 = vpop.f32.mrf.mxu0
  %v437 = vadd.f32 %v377, %v436
  %v438 = vpop.f32.mrf.mxu0
  %v439 = vadd.f32 %v377, %v438
  %440 = vmatmul.bf16.gmra.mxu0 %v344
  %v441 = vpop.f32.mrf.mxu0
  %v442 = vadd.f32 %v377, %v441
  %v443 = vpop.f32.mrf.mxu0
  %v444 = vadd.f32 %v377, %v443
  %445 = vmatmul.bf16.gmra.mxu0 %v345
  %v446 = vpop.f32.mrf.mxu0
  %v447 = vadd.f32 %v377, %v446
  %v448 = vpop.f32.mrf.mxu0
  %v449 = vadd.f32 %v377, %v448
  %450 = vmatmul.bf16.gmra.mxu0 %v346
  %v451 = vpop.f32.mrf.mxu0
  %v452 = vadd.f32 %v377, %v451
  %v453 = vpop.f32.mrf.mxu0
  %v454 = vadd.f32 %v377, %v453
  %455 = vmatmul.bf16.gmra.mxu0 %v347
  %v456 = vpop.f32.mrf.mxu0
  %v457 = vadd.f32 %v377, %v456
  %v458 = vpop.f32.mrf.mxu0
  %v459 = vadd.f32 %v377, %v458
  %460 = vmatmul.bf16.gmra.mxu0 %v348
  %v461 = vpop.f32.mrf.mxu0
  %v462 = vadd.f32 %v377, %v461
  %v463 = vpop.f32.mrf.mxu0
  %v464 = vadd.f32 %v377, %v463
  %465 = vmatmul.bf16.gmra.mxu0 %v349
  %v466 = vpop.f32.mrf.mxu0
  %v467 = vadd.f32 %v377, %v466
  %v468 = vpop.f32.mrf.mxu0
  %v469 = vadd.f32 %v377, %v468
  %470 = vmatmul.bf16.gmra.mxu0 %v350
  %v471 = vpop.f32.mrf.mxu0
  %v472 = vadd.f32 %v377, %v471
  %v473 = vpop.f32.mrf.mxu0
  %v474 = vadd.f32 %v377, %v473
  %475 = vmatmul.bf16.gmra.mxu0 %v351
  %v476 = vpop.f32.mrf.mxu0
  %v477 = vadd.f32 %v377, %v476
  %v478 = vpop.f32.mrf.mxu0
  %v479 = vadd.f32 %v377, %v478
  %480 = vmatmul.bf16.gmra.mxu0 %v352
  %v481 = vpop.f32.mrf.mxu0
  %v482 = vadd.f32 %v377, %v481
  %v483 = vpop.f32.mrf.mxu0
  %v484 = vadd.f32 %v377, %v483
  %485 = vmatmul.bf16.gmra.mxu0 %v353
  %v486 = vpop.f32.mrf.mxu0
  %v487 = vadd.f32 %v377, %v486
  %v488 = vpop.f32.mrf.mxu0
  %v489 = vadd.f32 %v377, %v488
  %490 = vmatmul.bf16.gmra.mxu0 %v354
  %v491 = vpop.f32.mrf.mxu0
  %v492 = vadd.f32 %v377, %v491
  %v493 = vpop.f32.mrf.mxu0
  %v494 = vadd.f32 %v377, %v493
  %495 = vmatmul.bf16.gmra.mxu0 %v355
  %v496 = vpop.f32.mrf.mxu0
  %v497 = vadd.f32 %v377, %v496
  %v498 = vpop.f32.mrf.mxu0
  %v499 = vadd.f32 %v377, %v498
  %500 = vmatmul.bf16.gmra.mxu0 %v356
  %v501 = vpop.f32.mrf.mxu0
  %v502 = vadd.f32 %v377, %v501
  %v503 = vpop.f32.mrf.mxu0
  %v504 = vadd.f32 %v377, %v503
  %505 = vmatmul.bf16.gmra.mxu0 %v357
  %v506 = vpop.f32.mrf.mxu0
  %v507 = vadd.f32 %v377, %v506
  %v508 = vpop.f32.mrf.mxu0
  %v509 = vadd.f32 %v377, %v508
  %510 = vmatmul.bf16.gmra.mxu0 %v358
  %v511 = vpop.f32.mrf.mxu0
  %v512 = vadd.f32 %v377, %v511
  %v513 = vpop.f32.mrf.mxu0
  %v514 = vadd.f32 %v377, %v513
  %515 = vdwg.mxu0
  %v516 = vmax.f32 %v437, 0.0
  %v517 = vmax.f32 %v439, 0.0
  %v518 = vmax.f32 %v442, 0.0
  %v519 = vmax.f32 %v444, 0.0
  %v520 = vmax.f32 %v447, 0.0
  %v521 = vmax.f32 %v449, 0.0
  %v522 = vmax.f32 %v452, 0.0
  %v523 = vmax.f32 %v454, 0.0
  %v524 = vmax.f32 %v457, 0.0
  %v525 = vmax.f32 %v459, 0.0
  %v526 = vmax.f32 %v462, 0.0
  %v527 = vmax.f32 %v464, 0.0
  %v528 = vmax.f32 %v467, 0.0
  %v529 = vmax.f32 %v469, 0.0
  %v530 = vmax.f32 %v472, 0.0
  %v531 = vmax.f32 %v474, 0.0
  %v532 = vmax.f32 %v477, 0.0
  %v533 = vmax.f32 %v479, 0.0
  %v534 = vmax.f32 %v482, 0.0
  %v535 = vmax.f32 %v484, 0.0
  %v536 = vmax.f32 %v487, 0.0
  %v537 = vmax.f32 %v489, 0.0
  %v538 = vmax.f32 %v492, 0.0
  %v539 = vmax.f32 %v494, 0.0
  %v540 = vmax.f32 %v497, 0.0
  %v541 = vmax.f32 %v499, 0.0
  %v542 = vmax.f32 %v502, 0.0
  %v543 = vmax.f32 %v504, 0.0
  %v544 = vmax.f32 %v507, 0.0
  %v545 = vmax.f32 %v509, 0.0
  %v546 = vmax.f32 %v512, 0.0
  %v547 = vmax.f32 %v514, 0.0
  %v548 = vpack.c.bf16 %v517, %v516
  %v549 = vpack.c.bf16 %v519, %v518
  %v550 = vpack.c.bf16 %v521, %v520
  %v551 = vpack.c.bf16 %v523, %v522
  %v552 = vpack.c.bf16 %v525, %v524
  %v553 = vpack.c.bf16 %v527, %v526
  %v554 = vpack.c.bf16 %v529, %v528
  %v555 = vpack.c.bf16 %v531, %v530
  %v556 = vpack.c.bf16 %v533, %v532
  %v557 = vpack.c.bf16 %v535, %v534
  %v558 = vpack.c.bf16 %v537, %v536
  %v559 = vpack.c.bf16 %v539, %v538
  %v560 = vpack.c.bf16 %v541, %v540
  %v561 = vpack.c.bf16 %v543, %v542
  %v562 = vpack.c.bf16 %v545, %v544
  %v563 = vpack.c.bf16 %v547, %v546
  %v564 = vld [vmem:[%s5] sm:$0xf]
  %v565 = vld [vmem:[%s5 + $0x4] sm:$0xf]
  %v566 = vld [vmem:[%s5 + $0x8] sm:$0xf]
  %v567 = vld [vmem:[%s5 + $0xc] sm:$0xf]
  %v568 = vld [vmem:[%s5 + $0x10] sm:$0xf]
  %v569 = vld [vmem:[%s5 + $0x14] sm:$0xf]
  %v570 = vld [vmem:[%s5 + $0x18] sm:$0xf]
  %v571 = vld [vmem:[%s5 + $0x1c] sm:$0xf]
  %v572 = vld [vmem:[%s5 + $0x20] sm:$0xf]
  %v573 = vld [vmem:[%s5 + $0x24] sm:$0xf]
  %v574 = vld [vmem:[%s5 + $0x28] sm:$0xf]
  %v575 = vld [vmem:[%s5 + $0x2c] sm:$0xf]
  %v576 = vld [vmem:[%s5 + $0x30] sm:$0xf]
  %v577 = vld [vmem:[%s5 + $0x34] sm:$0xf]
  %v578 = vld [vmem:[%s5 + $0x38] sm:$0xf]
  %v579 = vld [vmem:[%s5 + $0x3c] sm:$0xf]
  %v580 = vld [vmem:[%s6] sm:$0x1]
  %v582 = vperm.slane %v580, 0
  %v600 = vunpack.c.l.b16 %v564
  %v601 = vunpack.c.l.b16 %v565
  %v602 = vunpack.c.l.b16 %v566
  %v603 = vunpack.c.l.b16 %v567
  %v604 = vunpack.c.l.b16 %v568
  %v605 = vunpack.c.l.b16 %v569
  %v606 = vunpack.c.l.b16 %v570
  %v607 = vunpack.c.l.b16 %v571
  %v608 = vunpack.c.l.b16 %v572
  %v609 = vunpack.c.l.b16 %v573
  %v610 = vunpack.c.l.b16 %v574
  %v611 = vunpack.c.l.b16 %v575
  %v612 = vunpack.c.l.b16 %v576
  %v613 = vunpack.c.l.b16 %v577
  %v614 = vunpack.c.l.b16 %v578
  %v615 = vunpack.c.l.b16 %v579
  %v616 = vpack.c.b16 %v601, %v600
  %v617 = vpack.c.b16 %v603, %v602
  %v618 = vpack.c.b16 %v605, %v604
  %v619 = vpack.c.b16 %v607, %v606
  %v620 = vpack.c.b16 %v609, %v608
  %v621 = vpack.c.b16 %v611, %v610
  %v622 = vpack.c.b16 %v613, %v612
  %v623 = vpack.c.b16 %v615, %v614
  %632 = vmatpush.bf16.msra.mxu0 %v623
  %633 = vmatpush.bf16.msra.mxu0 %v622
  %634 = vmatpush.bf16.msra.mxu0 %v621
  %635 = vmatpush.bf16.msra.mxu0 %v620
  %636 = vmatpush.bf16.msra.mxu0 %v619
  %637 = vmatpush.bf16.msra.mxu0 %v618
  %638 = vmatpush.bf16.msra.mxu0 %v617
  %639 = vmatpush.bf16.msra.mxu0 %v616
  %640 = vmatmul.bf16.gmra.mxu0 %v548
  %v641 = vpop.f32.mrf.mxu0
  %v642 = vadd.f32 %v582, %v641
  %v643 = vpop.f32.mrf.mxu0
  %v644 = vadd.f32 %v582, %v643
  %645 = vmatmul.bf16.gmra.mxu0 %v549
  %v646 = vpop.f32.mrf.mxu0
  %v647 = vadd.f32 %v582, %v646
  %v648 = vpop.f32.mrf.mxu0
  %v649 = vadd.f32 %v582, %v648
  %650 = vmatmul.bf16.gmra.mxu0 %v550
  %v651 = vpop.f32.mrf.mxu0
  %v652 = vadd.f32 %v582, %v651
  %v653 = vpop.f32.mrf.mxu0
  %v654 = vadd.f32 %v582, %v653
  %655 = vmatmul.bf16.gmra.mxu0 %v551
  %v656 = vpop.f32.mrf.mxu0
  %v657 = vadd.f32 %v582, %v656
  %v658 = vpop.f32.mrf.mxu0
  %v659 = vadd.f32 %v582, %v658
  %660 = vmatmul.bf16.gmra.mxu0 %v552
  %v661 = vpop.f32.mrf.mxu0
  %v662 = vadd.f32 %v582, %v661
  %v663 = vpop.f32.mrf.mxu0
  %v664 = vadd.f32 %v582, %v663
  %665 = vmatmul.bf16.gmra.mxu0 %v553
  %v666 = vpop.f32.mrf.mxu0
  %v667 = vadd.f32 %v582, %v666
  %v668 = vpop.f32.mrf.mxu0
  %v669 = vadd.f32 %v582, %v668
  %670 = vmatmul.bf16.gmra.mxu0 %v554
  %v671 = vpop.f32.mrf.mxu0
  %v672 = vadd.f32 %v582, %v671
  %v673 = vpop.f32.mrf.mxu0
  %v674 = vadd.f32 %v582, %v673
  %675 = vmatmul.bf16.gmra.mxu0 %v555
  %v676 = vpop.f32.mrf.mxu0
  %v677 = vadd.f32 %v582, %v676
  %v678 = vpop.f32.mrf.mxu0
  %v679 = vadd.f32 %v582, %v678
  %680 = vmatmul.bf16.gmra.mxu0 %v556
  %v681 = vpop.f32.mrf.mxu0
  %v682 = vadd.f32 %v582, %v681
  %v683 = vpop.f32.mrf.mxu0
  %v684 = vadd.f32 %v582, %v683
  %685 = vmatmul.bf16.gmra.mxu0 %v557
  %v686 = vpop.f32.mrf.mxu0
  %v687 = vadd.f32 %v582, %v686
  %v688 = vpop.f32.mrf.mxu0
  %v689 = vadd.f32 %v582, %v688
  %690 = vmatmul.bf16.gmra.mxu0 %v558
  %v691 = vpop.f32.mrf.mxu0
  %v692 = vadd.f32 %v582, %v691
  %v693 = vpop.f32.mrf.mxu0
  %v694 = vadd.f32 %v582, %v693
  %695 = vmatmul.bf16.gmra.mxu0 %v559
  %v696 = vpop.f32.mrf.mxu0
  %v697 = vadd.f32 %v582, %v696
  %v698 = vpop.f32.mrf.mxu0
  %v699 = vadd.f32 %v582, %v698
  %700 = vmatmul.bf16.gmra.mxu0 %v560
  %v701 = vpop.f32.mrf.mxu0
  %v702 = vadd.f32 %v582, %v701
  %v703 = vpop.f32.mrf.mxu0
  %v704 = vadd.f32 %v582, %v703
  %705 = vmatmul.bf16.gmra.mxu0 %v561
  %v706 = vpop.f32.mrf.mxu0
  %v707 = vadd.f32 %v582, %v706
  %v708 = vpop.f32.mrf.mxu0
  %v709 = vadd.f32 %v582, %v708
  %710 = vmatmul.bf16.gmra.mxu0 %v562
  %v711 = vpop.f32.mrf.mxu0
  %v712 = vadd.f32 %v582, %v711
  %v713 = vpop.f32.mrf.mxu0
  %v714 = vadd.f32 %v582, %v713
  %715 = vmatmul.bf16.gmra.mxu0 %v563
  %v716 = vpop.f32.mrf.mxu0
  %v717 = vadd.f32 %v582, %v716
  %v718 = vpop.f32.mrf.mxu0
  %v719 = vadd.f32 %v582, %v718
  %720 = vdwg.mxu0
  %v721 = vxor.u32 %v642, 2147483648
  %v722 = vxor.u32 %v644, 2147483648
  %v723 = vxor.u32 %v647, 2147483648
  %v724 = vxor.u32 %v649, 2147483648
  %v725 = vxor.u32 %v652, 2147483648
  %v726 = vxor.u32 %v654, 2147483648
  %v727 = vxor.u32 %v657, 2147483648
  %v728 = vxor.u32 %v659, 2147483648
  %v729 = vxor.u32 %v662, 2147483648
  %v730 = vxor.u32 %v664, 2147483648
  %v731 = vxor.u32 %v667, 2147483648
  %v732 = vxor.u32 %v669, 2147483648
  %v733 = vxor.u32 %v672, 2147483648
  %v734 = vxor.u32 %v674, 2147483648
  %v735 = vxor.u32 %v677, 2147483648
  %v736 = vxor.u32 %v679, 2147483648
  %v737 = vxor.u32 %v682, 2147483648
  %v738 = vxor.u32 %v684, 2147483648
  %v739 = vxor.u32 %v687, 2147483648
  %v740 = vxor.u32 %v689, 2147483648
  %v741 = vxor.u32 %v692, 2147483648
  %v742 = vxor.u32 %v694, 2147483648
  %v743 = vxor.u32 %v697, 2147483648
  %v744 = vxor.u32 %v699, 2147483648
  %v745 = vxor.u32 %v702, 2147483648
  %v746 = vxor.u32 %v704, 2147483648
  %v747 = vxor.u32 %v707, 2147483648
  %v748 = vxor.u32 %v709, 2147483648
  %v749 = vxor.u32 %v712, 2147483648
  %v750 = vxor.u32 %v714, 2147483648
  %v751 = vxor.u32 %v717, 2147483648
  %v752 = vxor.u32 %v719, 2147483648
  %v753 = vmul.f32 %v721, 1.442695
  %v754 = vpow.pop %v753
  %v755 = vmul.f32 %v722, 1.442695
  %v756 = vpow.pop %v755
  %v757 = vmul.f32 %v723, 1.442695
  %v758 = vpow.pop %v757
  %v759 = vmul.f32 %v724, 1.442695
  %v760 = vpow.pop %v759
  %v761 = vmul.f32 %v725, 1.442695
  %v762 = vpow.pop %v761
  %v763 = vmul.f32 %v726, 1.442695
  %v764 = vpow.pop %v763
  %v765 = vmul.f32 %v727, 1.442695
  %v766 = vpow.pop %v765
  %v767 = vmul.f32 %v728, 1.442695
  %v768 = vpow.pop %v767
  %v769 = vmul.f32 %v729, 1.442695
  %v770 = vpow.pop %v769
  %v771 = vmul.f32 %v730, 1.442695
  %v772 = vpow.pop %v771
  %v773 = vmul.f32 %v731, 1.442695
  %v774 = vpow.pop %v773
  %v775 = vmul.f32 %v732, 1.442695
  %v776 = vpow.pop %v775
  %v777 = vmul.f32 %v733, 1.442695
  %v778 = vpow.pop %v777
  %v779 = vmul.f32 %v734, 1.442695
  %v780 = vpow.pop %v779
  %v781 = vmul.f32 %v735, 1.442695
  %v782 = vpow.pop %v781
  %v783 = vmul.f32 %v736, 1.442695
  %v784 = vpow.pop %v783
  %v785 = vmul.f32 %v737, 1.442695
  %v786 = vpow.pop %v785
  %v787 = vmul.f32 %v738, 1.442695
  %v788 = vpow.pop %v787
  %v789 = vmul.f32 %v739, 1.442695
  %v790 = vpow.pop %v789
  %v791 = vmul.f32 %v740, 1.442695
  %v792 = vpow.pop %v791
  %v793 = vmul.f32 %v741, 1.442695
  %v794 = vpow.pop %v793
  %v795 = vmul.f32 %v742, 1.442695
  %v796 = vpow.pop %v795
  %v797 = vmul.f32 %v743, 1.442695
  %v798 = vpow.pop %v797
  %v799 = vmul.f32 %v744, 1.442695
  %v800 = vpow.pop %v799
  %v801 = vmul.f32 %v745, 1.442695
  %v802 = vpow.pop %v801
  %v803 = vmul.f32 %v746, 1.442695
  %v804 = vpow.pop %v803
  %v805 = vmul.f32 %v747, 1.442695
  %v806 = vpow.pop %v805
  %v807 = vmul.f32 %v748, 1.442695
  %v808 = vpow.pop %v807
  %v809 = vmul.f32 %v749, 1.442695
  %v810 = vpow.pop %v809
  %v811 = vmul.f32 %v750, 1.442695
  %v812 = vpow.pop %v811
  %v813 = vmul.f32 %v751, 1.442695
  %v814 = vpow.pop %v813
  %v815 = vmul.f32 %v752, 1.442695
  %v816 = vpow.pop %v815
  %v817 = vadd.f32 %v754, 1.0
  %v818 = vadd.f32 %v756, 1.0
  %v819 = vadd.f32 %v758, 1.0
  %v820 = vadd.f32 %v760, 1.0
  %v821 = vadd.f32 %v762, 1.0
  %v822 = vadd.f32 %v764, 1.0
  %v823 = vadd.f32 %v766, 1.0
  %v824 = vadd.f32 %v768, 1.0
  %v825 = vadd.f32 %v770, 1.0
  %v826 = vadd.f32 %v772, 1.0
  %v827 = vadd.f32 %v774, 1.0
  %v828 = vadd.f32 %v776, 1.0
  %v829 = vadd.f32 %v778, 1.0
  %v830 = vadd.f32 %v780, 1.0
  %v831 = vadd.f32 %v782, 1.0
  %v832 = vadd.f32 %v784, 1.0
  %v833 = vadd.f32 %v786, 1.0
  %v834 = vadd.f32 %v788, 1.0
  %v835 = vadd.f32 %v790, 1.0
  %v836 = vadd.f32 %v792, 1.0
  %v837 = vadd.f32 %v794, 1.0
  %v838 = vadd.f32 %v796, 1.0
  %v839 = vadd.f32 %v798, 1.0
  %v840 = vadd.f32 %v800, 1.0
  %v841 = vadd.f32 %v802, 1.0
  %v842 = vadd.f32 %v804, 1.0
  %v843 = vadd.f32 %v806, 1.0
  %v844 = vadd.f32 %v808, 1.0
  %v845 = vadd.f32 %v810, 1.0
  %v846 = vadd.f32 %v812, 1.0
  %v847 = vadd.f32 %v814, 1.0
  %v848 = vadd.f32 %v816, 1.0
  %v849 = vrcp.pop %v817
  %v850 = vmul.f32 %v817, %v849
  %v851 = vsub.f32 1.0, %v850
  %v852 = vmul.f32 %v849, %v851
  %v853 = vadd.f32 %v849, %v852
  %vm854 = vweird.f32 %v817
  %vm855 = vweird.f32 %v849
  %vm856 = vmor %vm854, %vm855
  %v857 = vsel %vm856, %v849, %v853
  %v858 = vand.u32 2147483647, %v817
  %vm859 = vcmp.eq.f32.partialorder %v858, 8.507059e+37
  %v860 = vand.u32 %v817, 2147483648
  %v861 = vor.u32 1.1754944e-38, %v860
  %v862 = vsel %vm859, %v861, %v857
  %v863 = vmul.f32 1.0, %v862
  %v864 = vrcp.pop %v818
  %v865 = vmul.f32 %v818, %v864
  %v866 = vsub.f32 1.0, %v865
  %v867 = vmul.f32 %v864, %v866
  %v868 = vadd.f32 %v864, %v867
  %vm869 = vweird.f32 %v818
  %vm870 = vweird.f32 %v864
  %vm871 = vmor %vm869, %vm870
  %v872 = vsel %vm871, %v864, %v868
  %v873 = vand.u32 2147483647, %v818
  %vm874 = vcmp.eq.f32.partialorder %v873, 8.507059e+37
  %v875 = vand.u32 %v818, 2147483648
  %v876 = vor.u32 1.1754944e-38, %v875
  %v877 = vsel %vm874, %v876, %v872
  %v878 = vmul.f32 1.0, %v877
  %v879 = vrcp.pop %v819
  %v880 = vmul.f32 %v819, %v879
  %v881 = vsub.f32 1.0, %v880
  %v882 = vmul.f32 %v879, %v881
  %v883 = vadd.f32 %v879, %v882
  %vm884 = vweird.f32 %v819
  %vm885 = vweird.f32 %v879
  %vm886 = vmor %vm884, %vm885
  %v887 = vsel %vm886, %v879, %v883
  %v888 = vand.u32 2147483647, %v819
  %vm889 = vcmp.eq.f32.partialorder %v888, 8.507059e+37
  %v890 = vand.u32 %v819, 2147483648
  %v891 = vor.u32 1.1754944e-38, %v890
  %v892 = vsel %vm889, %v891, %v887
  %v893 = vmul.f32 1.0, %v892
  %v894 = vrcp.pop %v820
  %v895 = vmul.f32 %v820, %v894
  %v896 = vsub.f32 1.0, %v895
  %v897 = vmul.f32 %v894, %v896
  %v898 = vadd.f32 %v894, %v897
  %vm899 = vweird.f32 %v820
  %vm900 = vweird.f32 %v894
  %vm901 = vmor %vm899, %vm900
  %v902 = vsel %vm901, %v894, %v898
  %v903 = vand.u32 2147483647, %v820
  %vm904 = vcmp.eq.f32.partialorder %v903, 8.507059e+37
  %v905 = vand.u32 %v820, 2147483648
  %v906 = vor.u32 1.1754944e-38, %v905
  %v907 = vsel %vm904, %v906, %v902
  %v908 = vmul.f32 1.0, %v907
  %v909 = vrcp.pop %v821
  %v910 = vmul.f32 %v821, %v909
  %v911 = vsub.f32 1.0, %v910
  %v912 = vmul.f32 %v909, %v911
  %v913 = vadd.f32 %v909, %v912
  %vm914 = vweird.f32 %v821
  %vm915 = vweird.f32 %v909
  %vm916 = vmor %vm914, %vm915
  %v917 = vsel %vm916, %v909, %v913
  %v918 = vand.u32 2147483647, %v821
  %vm919 = vcmp.eq.f32.partialorder %v918, 8.507059e+37
  %v920 = vand.u32 %v821, 2147483648
  %v921 = vor.u32 1.1754944e-38, %v920
  %v922 = vsel %vm919, %v921, %v917
  %v923 = vmul.f32 1.0, %v922
  %v924 = vrcp.pop %v822
  %v925 = vmul.f32 %v822, %v924
  %v926 = vsub.f32 1.0, %v925
  %v927 = vmul.f32 %v924, %v926
  %v928 = vadd.f32 %v924, %v927
  %vm929 = vweird.f32 %v822
  %vm930 = vweird.f32 %v924
  %vm931 = vmor %vm929, %vm930
  %v932 = vsel %vm931, %v924, %v928
  %v933 = vand.u32 2147483647, %v822
  %vm934 = vcmp.eq.f32.partialorder %v933, 8.507059e+37
  %v935 = vand.u32 %v822, 2147483648
  %v936 = vor.u32 1.1754944e-38, %v935
  %v937 = vsel %vm934, %v936, %v932
  %v938 = vmul.f32 1.0, %v937
  %v939 = vrcp.pop %v823
  %v940 = vmul.f32 %v823, %v939
  %v941 = vsub.f32 1.0, %v940
  %v942 = vmul.f32 %v939, %v941
  %v943 = vadd.f32 %v939, %v942
  %vm944 = vweird.f32 %v823
  %vm945 = vweird.f32 %v939
  %vm946 = vmor %vm944, %vm945
  %v947 = vsel %vm946, %v939, %v943
  %v948 = vand.u32 2147483647, %v823
  %vm949 = vcmp.eq.f32.partialorder %v948, 8.507059e+37
  %v950 = vand.u32 %v823, 2147483648
  %v951 = vor.u32 1.1754944e-38, %v950
  %v952 = vsel %vm949, %v951, %v947
  %v953 = vmul.f32 1.0, %v952
  %v954 = vrcp.pop %v824
  %v955 = vmul.f32 %v824, %v954
  %v956 = vsub.f32 1.0, %v955
  %v957 = vmul.f32 %v954, %v956
  %v958 = vadd.f32 %v954, %v957
  %vm959 = vweird.f32 %v824
  %vm960 = vweird.f32 %v954
  %vm961 = vmor %vm959, %vm960
  %v962 = vsel %vm961, %v954, %v958
  %v963 = vand.u32 2147483647, %v824
  %vm964 = vcmp.eq.f32.partialorder %v963, 8.507059e+37
  %v965 = vand.u32 %v824, 2147483648
  %v966 = vor.u32 1.1754944e-38, %v965
  %v967 = vsel %vm964, %v966, %v962
  %v968 = vmul.f32 1.0, %v967
  %v969 = vrcp.pop %v825
  %v970 = vmul.f32 %v825, %v969
  %v971 = vsub.f32 1.0, %v970
  %v972 = vmul.f32 %v969, %v971
  %v973 = vadd.f32 %v969, %v972
  %vm974 = vweird.f32 %v825
  %vm975 = vweird.f32 %v969
  %vm976 = vmor %vm974, %vm975
  %v977 = vsel %vm976, %v969, %v973
  %v978 = vand.u32 2147483647, %v825
  %vm979 = vcmp.eq.f32.partialorder %v978, 8.507059e+37
  %v980 = vand.u32 %v825, 2147483648
  %v981 = vor.u32 1.1754944e-38, %v980
  %v982 = vsel %vm979, %v981, %v977
  %v983 = vmul.f32 1.0, %v982
  %v984 = vrcp.pop %v826
  %v985 = vmul.f32 %v826, %v984
  %v986 = vsub.f32 1.0, %v985
  %v987 = vmul.f32 %v984, %v986
  %v988 = vadd.f32 %v984, %v987
  %vm989 = vweird.f32 %v826
  %vm990 = vweird.f32 %v984
  %vm991 = vmor %vm989, %vm990
  %v992 = vsel %vm991, %v984, %v988
  %v993 = vand.u32 2147483647, %v826
  %vm994 = vcmp.eq.f32.partialorder %v993, 8.507059e+37
  %v995 = vand.u32 %v826, 2147483648
  %v996 = vor.u32 1.1754944e-38, %v995
  %v997 = vsel %vm994, %v996, %v992
  %v998 = vmul.f32 1.0, %v997
  %v999 = vrcp.pop %v827
  %v1000 = vmul.f32 %v827, %v999
  %v1001 = vsub.f32 1.0, %v1000
  %v1002 = vmul.f32 %v999, %v1001
  %v1003 = vadd.f32 %v999, %v1002
  %vm1004 = vweird.f32 %v827
  %vm1005 = vweird.f32 %v999
  %vm1006 = vmor %vm1004, %vm1005
  %v1007 = vsel %vm1006, %v999, %v1003
  %v1008 = vand.u32 2147483647, %v827
  %vm1009 = vcmp.eq.f32.partialorder %v1008, 8.507059e+37
  %v1010 = vand.u32 %v827, 2147483648
  %v1011 = vor.u32 1.1754944e-38, %v1010
  %v1012 = vsel %vm1009, %v1011, %v1007
  %v1013 = vmul.f32 1.0, %v1012
  %v1014 = vrcp.pop %v828
  %v1015 = vmul.f32 %v828, %v1014
  %v1016 = vsub.f32 1.0, %v1015
  %v1017 = vmul.f32 %v1014, %v1016
  %v1018 = vadd.f32 %v1014, %v1017
  %vm1019 = vweird.f32 %v828
  %vm1020 = vweird.f32 %v1014
  %vm1021 = vmor %vm1019, %vm1020
  %v1022 = vsel %vm1021, %v1014, %v1018
  %v1023 = vand.u32 2147483647, %v828
  %vm1024 = vcmp.eq.f32.partialorder %v1023, 8.507059e+37
  %v1025 = vand.u32 %v828, 2147483648
  %v1026 = vor.u32 1.1754944e-38, %v1025
  %v1027 = vsel %vm1024, %v1026, %v1022
  %v1028 = vmul.f32 1.0, %v1027
  %v1029 = vrcp.pop %v829
  %v1030 = vmul.f32 %v829, %v1029
  %v1031 = vsub.f32 1.0, %v1030
  %v1032 = vmul.f32 %v1029, %v1031
  %v1033 = vadd.f32 %v1029, %v1032
  %vm1034 = vweird.f32 %v829
  %vm1035 = vweird.f32 %v1029
  %vm1036 = vmor %vm1034, %vm1035
  %v1037 = vsel %vm1036, %v1029, %v1033
  %v1038 = vand.u32 2147483647, %v829
  %vm1039 = vcmp.eq.f32.partialorder %v1038, 8.507059e+37
  %v1040 = vand.u32 %v829, 2147483648
  %v1041 = vor.u32 1.1754944e-38, %v1040
  %v1042 = vsel %vm1039, %v1041, %v1037
  %v1043 = vmul.f32 1.0, %v1042
  %v1044 = vrcp.pop %v830
  %v1045 = vmul.f32 %v830, %v1044
  %v1046 = vsub.f32 1.0, %v1045
  %v1047 = vmul.f32 %v1044, %v1046
  %v1048 = vadd.f32 %v1044, %v1047
  %vm1049 = vweird.f32 %v830
  %vm1050 = vweird.f32 %v1044
  %vm1051 = vmor %vm1049, %vm1050
  %v1052 = vsel %vm1051, %v1044, %v1048
  %v1053 = vand.u32 2147483647, %v830
  %vm1054 = vcmp.eq.f32.partialorder %v1053, 8.507059e+37
  %v1055 = vand.u32 %v830, 2147483648
  %v1056 = vor.u32 1.1754944e-38, %v1055
  %v1057 = vsel %vm1054, %v1056, %v1052
  %v1058 = vmul.f32 1.0, %v1057
  %v1059 = vrcp.pop %v831
  %v1060 = vmul.f32 %v831, %v1059
  %v1061 = vsub.f32 1.0, %v1060
  %v1062 = vmul.f32 %v1059, %v1061
  %v1063 = vadd.f32 %v1059, %v1062
  %vm1064 = vweird.f32 %v831
  %vm1065 = vweird.f32 %v1059
  %vm1066 = vmor %vm1064, %vm1065
  %v1067 = vsel %vm1066, %v1059, %v1063
  %v1068 = vand.u32 2147483647, %v831
  %vm1069 = vcmp.eq.f32.partialorder %v1068, 8.507059e+37
  %v1070 = vand.u32 %v831, 2147483648
  %v1071 = vor.u32 1.1754944e-38, %v1070
  %v1072 = vsel %vm1069, %v1071, %v1067
  %v1073 = vmul.f32 1.0, %v1072
  %v1074 = vrcp.pop %v832
  %v1075 = vmul.f32 %v832, %v1074
  %v1076 = vsub.f32 1.0, %v1075
  %v1077 = vmul.f32 %v1074, %v1076
  %v1078 = vadd.f32 %v1074, %v1077
  %vm1079 = vweird.f32 %v832
  %vm1080 = vweird.f32 %v1074
  %vm1081 = vmor %vm1079, %vm1080
  %v1082 = vsel %vm1081, %v1074, %v1078
  %v1083 = vand.u32 2147483647, %v832
  %vm1084 = vcmp.eq.f32.partialorder %v1083, 8.507059e+37
  %v1085 = vand.u32 %v832, 2147483648
  %v1086 = vor.u32 1.1754944e-38, %v1085
  %v1087 = vsel %vm1084, %v1086, %v1082
  %v1088 = vmul.f32 1.0, %v1087
  %v1089 = vrcp.pop %v833
  %v1090 = vmul.f32 %v833, %v1089
  %v1091 = vsub.f32 1.0, %v1090
  %v1092 = vmul.f32 %v1089, %v1091
  %v1093 = vadd.f32 %v1089, %v1092
  %vm1094 = vweird.f32 %v833
  %vm1095 = vweird.f32 %v1089
  %vm1096 = vmor %vm1094, %vm1095
  %v1097 = vsel %vm1096, %v1089, %v1093
  %v1098 = vand.u32 2147483647, %v833
  %vm1099 = vcmp.eq.f32.partialorder %v1098, 8.507059e+37
  %v1100 = vand.u32 %v833, 2147483648
  %v1101 = vor.u32 1.1754944e-38, %v1100
  %v1102 = vsel %vm1099, %v1101, %v1097
  %v1103 = vmul.f32 1.0, %v1102
  %v1104 = vrcp.pop %v834
  %v1105 = vmul.f32 %v834, %v1104
  %v1106 = vsub.f32 1.0, %v1105
  %v1107 = vmul.f32 %v1104, %v1106
  %v1108 = vadd.f32 %v1104, %v1107
  %vm1109 = vweird.f32 %v834
  %vm1110 = vweird.f32 %v1104
  %vm1111 = vmor %vm1109, %vm1110
  %v1112 = vsel %vm1111, %v1104, %v1108
  %v1113 = vand.u32 2147483647, %v834
  %vm1114 = vcmp.eq.f32.partialorder %v1113, 8.507059e+37
  %v1115 = vand.u32 %v834, 2147483648
  %v1116 = vor.u32 1.1754944e-38, %v1115
  %v1117 = vsel %vm1114, %v1116, %v1112
  %v1118 = vmul.f32 1.0, %v1117
  %v1119 = vrcp.pop %v835
  %v1120 = vmul.f32 %v835, %v1119
  %v1121 = vsub.f32 1.0, %v1120
  %v1122 = vmul.f32 %v1119, %v1121
  %v1123 = vadd.f32 %v1119, %v1122
  %vm1124 = vweird.f32 %v835
  %vm1125 = vweird.f32 %v1119
  %vm1126 = vmor %vm1124, %vm1125
  %v1127 = vsel %vm1126, %v1119, %v1123
  %v1128 = vand.u32 2147483647, %v835
  %vm1129 = vcmp.eq.f32.partialorder %v1128, 8.507059e+37
  %v1130 = vand.u32 %v835, 2147483648
  %v1131 = vor.u32 1.1754944e-38, %v1130
  %v1132 = vsel %vm1129, %v1131, %v1127
  %v1133 = vmul.f32 1.0, %v1132
  %v1134 = vrcp.pop %v836
  %v1135 = vmul.f32 %v836, %v1134
  %v1136 = vsub.f32 1.0, %v1135
  %v1137 = vmul.f32 %v1134, %v1136
  %v1138 = vadd.f32 %v1134, %v1137
  %vm1139 = vweird.f32 %v836
  %vm1140 = vweird.f32 %v1134
  %vm1141 = vmor %vm1139, %vm1140
  %v1142 = vsel %vm1141, %v1134, %v1138
  %v1143 = vand.u32 2147483647, %v836
  %vm1144 = vcmp.eq.f32.partialorder %v1143, 8.507059e+37
  %v1145 = vand.u32 %v836, 2147483648
  %v1146 = vor.u32 1.1754944e-38, %v1145
  %v1147 = vsel %vm1144, %v1146, %v1142
  %v1148 = vmul.f32 1.0, %v1147
  %v1149 = vrcp.pop %v837
  %v1150 = vmul.f32 %v837, %v1149
  %v1151 = vsub.f32 1.0, %v1150
  %v1152 = vmul.f32 %v1149, %v1151
  %v1153 = vadd.f32 %v1149, %v1152
  %vm1154 = vweird.f32 %v837
  %vm1155 = vweird.f32 %v1149
  %vm1156 = vmor %vm1154, %vm1155
  %v1157 = vsel %vm1156, %v1149, %v1153
  %v1158 = vand.u32 2147483647, %v837
  %vm1159 = vcmp.eq.f32.partialorder %v1158, 8.507059e+37
  %v1160 = vand.u32 %v837, 2147483648
  %v1161 = vor.u32 1.1754944e-38, %v1160
  %v1162 = vsel %vm1159, %v1161, %v1157
  %v1163 = vmul.f32 1.0, %v1162
  %v1164 = vrcp.pop %v838
  %v1165 = vmul.f32 %v838, %v1164
  %v1166 = vsub.f32 1.0, %v1165
  %v1167 = vmul.f32 %v1164, %v1166
  %v1168 = vadd.f32 %v1164, %v1167
  %vm1169 = vweird.f32 %v838
  %vm1170 = vweird.f32 %v1164
  %vm1171 = vmor %vm1169, %vm1170
  %v1172 = vsel %vm1171, %v1164, %v1168
  %v1173 = vand.u32 2147483647, %v838
  %vm1174 = vcmp.eq.f32.partialorder %v1173, 8.507059e+37
  %v1175 = vand.u32 %v838, 2147483648
  %v1176 = vor.u32 1.1754944e-38, %v1175
  %v1177 = vsel %vm1174, %v1176, %v1172
  %v1178 = vmul.f32 1.0, %v1177
  %v1179 = vrcp.pop %v839
  %v1180 = vmul.f32 %v839, %v1179
  %v1181 = vsub.f32 1.0, %v1180
  %v1182 = vmul.f32 %v1179, %v1181
  %v1183 = vadd.f32 %v1179, %v1182
  %vm1184 = vweird.f32 %v839
  %vm1185 = vweird.f32 %v1179
  %vm1186 = vmor %vm1184, %vm1185
  %v1187 = vsel %vm1186, %v1179, %v1183
  %v1188 = vand.u32 2147483647, %v839
  %vm1189 = vcmp.eq.f32.partialorder %v1188, 8.507059e+37
  %v1190 = vand.u32 %v839, 2147483648
  %v1191 = vor.u32 1.1754944e-38, %v1190
  %v1192 = vsel %vm1189, %v1191, %v1187
  %v1193 = vmul.f32 1.0, %v1192
  %v1194 = vrcp.pop %v840
  %v1195 = vmul.f32 %v840, %v1194
  %v1196 = vsub.f32 1.0, %v1195
  %v1197 = vmul.f32 %v1194, %v1196
  %v1198 = vadd.f32 %v1194, %v1197
  %vm1199 = vweird.f32 %v840
  %vm1200 = vweird.f32 %v1194
  %vm1201 = vmor %vm1199, %vm1200
  %v1202 = vsel %vm1201, %v1194, %v1198
  %v1203 = vand.u32 2147483647, %v840
  %vm1204 = vcmp.eq.f32.partialorder %v1203, 8.507059e+37
  %v1205 = vand.u32 %v840, 2147483648
  %v1206 = vor.u32 1.1754944e-38, %v1205
  %v1207 = vsel %vm1204, %v1206, %v1202
  %v1208 = vmul.f32 1.0, %v1207
  %v1209 = vrcp.pop %v841
  %v1210 = vmul.f32 %v841, %v1209
  %v1211 = vsub.f32 1.0, %v1210
  %v1212 = vmul.f32 %v1209, %v1211
  %v1213 = vadd.f32 %v1209, %v1212
  %vm1214 = vweird.f32 %v841
  %vm1215 = vweird.f32 %v1209
  %vm1216 = vmor %vm1214, %vm1215
  %v1217 = vsel %vm1216, %v1209, %v1213
  %v1218 = vand.u32 2147483647, %v841
  %vm1219 = vcmp.eq.f32.partialorder %v1218, 8.507059e+37
  %v1220 = vand.u32 %v841, 2147483648
  %v1221 = vor.u32 1.1754944e-38, %v1220
  %v1222 = vsel %vm1219, %v1221, %v1217
  %v1223 = vmul.f32 1.0, %v1222
  %v1224 = vrcp.pop %v842
  %v1225 = vmul.f32 %v842, %v1224
  %v1226 = vsub.f32 1.0, %v1225
  %v1227 = vmul.f32 %v1224, %v1226
  %v1228 = vadd.f32 %v1224, %v1227
  %vm1229 = vweird.f32 %v842
  %vm1230 = vweird.f32 %v1224
  %vm1231 = vmor %vm1229, %vm1230
  %v1232 = vsel %vm1231, %v1224, %v1228
  %v1233 = vand.u32 2147483647, %v842
  %vm1234 = vcmp.eq.f32.partialorder %v1233, 8.507059e+37
  %v1235 = vand.u32 %v842, 2147483648
  %v1236 = vor.u32 1.1754944e-38, %v1235
  %v1237 = vsel %vm1234, %v1236, %v1232
  %v1238 = vmul.f32 1.0, %v1237
  %v1239 = vrcp.pop %v843
  %v1240 = vmul.f32 %v843, %v1239
  %v1241 = vsub.f32 1.0, %v1240
  %v1242 = vmul.f32 %v1239, %v1241
  %v1243 = vadd.f32 %v1239, %v1242
  %vm1244 = vweird.f32 %v843
  %vm1245 = vweird.f32 %v1239
  %vm1246 = vmor %vm1244, %vm1245
  %v1247 = vsel %vm1246, %v1239, %v1243
  %v1248 = vand.u32 2147483647, %v843
  %vm1249 = vcmp.eq.f32.partialorder %v1248, 8.507059e+37
  %v1250 = vand.u32 %v843, 2147483648
  %v1251 = vor.u32 1.1754944e-38, %v1250
  %v1252 = vsel %vm1249, %v1251, %v1247
  %v1253 = vmul.f32 1.0, %v1252
  %v1254 = vrcp.pop %v844
  %v1255 = vmul.f32 %v844, %v1254
  %v1256 = vsub.f32 1.0, %v1255
  %v1257 = vmul.f32 %v1254, %v1256
  %v1258 = vadd.f32 %v1254, %v1257
  %vm1259 = vweird.f32 %v844
  %vm1260 = vweird.f32 %v1254
  %vm1261 = vmor %vm1259, %vm1260
  %v1262 = vsel %vm1261, %v1254, %v1258
  %v1263 = vand.u32 2147483647, %v844
  %vm1264 = vcmp.eq.f32.partialorder %v1263, 8.507059e+37
  %v1265 = vand.u32 %v844, 2147483648
  %v1266 = vor.u32 1.1754944e-38, %v1265
  %v1267 = vsel %vm1264, %v1266, %v1262
  %v1268 = vmul.f32 1.0, %v1267
  %v1269 = vrcp.pop %v845
  %v1270 = vmul.f32 %v845, %v1269
  %v1271 = vsub.f32 1.0, %v1270
  %v1272 = vmul.f32 %v1269, %v1271
  %v1273 = vadd.f32 %v1269, %v1272
  %vm1274 = vweird.f32 %v845
  %vm1275 = vweird.f32 %v1269
  %vm1276 = vmor %vm1274, %vm1275
  %v1277 = vsel %vm1276, %v1269, %v1273
  %v1278 = vand.u32 2147483647, %v845
  %vm1279 = vcmp.eq.f32.partialorder %v1278, 8.507059e+37
  %v1280 = vand.u32 %v845, 2147483648
  %v1281 = vor.u32 1.1754944e-38, %v1280
  %v1282 = vsel %vm1279, %v1281, %v1277
  %v1283 = vmul.f32 1.0, %v1282
  %v1284 = vrcp.pop %v846
  %v1285 = vmul.f32 %v846, %v1284
  %v1286 = vsub.f32 1.0, %v1285
  %v1287 = vmul.f32 %v1284, %v1286
  %v1288 = vadd.f32 %v1284, %v1287
  %vm1289 = vweird.f32 %v846
  %vm1290 = vweird.f32 %v1284
  %vm1291 = vmor %vm1289, %vm1290
  %v1292 = vsel %vm1291, %v1284, %v1288
  %v1293 = vand.u32 2147483647, %v846
  %vm1294 = vcmp.eq.f32.partialorder %v1293, 8.507059e+37
  %v1295 = vand.u32 %v846, 2147483648
  %v1296 = vor.u32 1.1754944e-38, %v1295
  %v1297 = vsel %vm1294, %v1296, %v1292
  %v1298 = vmul.f32 1.0, %v1297
  %v1299 = vrcp.pop %v847
  %v1300 = vmul.f32 %v847, %v1299
  %v1301 = vsub.f32 1.0, %v1300
  %v1302 = vmul.f32 %v1299, %v1301
  %v1303 = vadd.f32 %v1299, %v1302
  %vm1304 = vweird.f32 %v847
  %vm1305 = vweird.f32 %v1299
  %vm1306 = vmor %vm1304, %vm1305
  %v1307 = vsel %vm1306, %v1299, %v1303
  %v1308 = vand.u32 2147483647, %v847
  %vm1309 = vcmp.eq.f32.partialorder %v1308, 8.507059e+37
  %v1310 = vand.u32 %v847, 2147483648
  %v1311 = vor.u32 1.1754944e-38, %v1310
  %v1312 = vsel %vm1309, %v1311, %v1307
  %v1313 = vmul.f32 1.0, %v1312
  %v1314 = vrcp.pop %v848
  %v1315 = vmul.f32 %v848, %v1314
  %v1316 = vsub.f32 1.0, %v1315
  %v1317 = vmul.f32 %v1314, %v1316
  %v1318 = vadd.f32 %v1314, %v1317
  %vm1319 = vweird.f32 %v848
  %vm1320 = vweird.f32 %v1314
  %vm1321 = vmor %vm1319, %vm1320
  %v1322 = vsel %vm1321, %v1314, %v1318
  %v1323 = vand.u32 2147483647, %v848
  %vm1324 = vcmp.eq.f32.partialorder %v1323, 8.507059e+37
  %v1325 = vand.u32 %v848, 2147483648
  %v1326 = vor.u32 1.1754944e-38, %v1325
  %v1327 = vsel %vm1324, %v1326, %v1322
  %v1328 = vmul.f32 1.0, %v1327
  %1329 = vst [vmem:[%s7] sm:$0xff] %v863
  %1330 = vst [vmem:[%s7 + $0x8] sm:$0xff] %v878
  %1331 = vst [vmem:[%s7 + $0x10] sm:$0xff] %v893
  %1332 = vst [vmem:[%s7 + $0x18] sm:$0xff] %v908
  %1333 = vst [vmem:[%s7 + $0x20] sm:$0xff] %v923
  %1334 = vst [vmem:[%s7 + $0x28] sm:$0xff] %v938
  %1335 = vst [vmem:[%s7 + $0x30] sm:$0xff] %v953
  %1336 = vst [vmem:[%s7 + $0x38] sm:$0xff] %v968
  %1337 = vst [vmem:[%s7 + $0x40] sm:$0xff] %v983
  %1338 = vst [vmem:[%s7 + $0x48] sm:$0xff] %v998
  %1339 = vst [vmem:[%s7 + $0x50] sm:$0xff] %v1013
  %1340 = vst [vmem:[%s7 + $0x58] sm:$0xff] %v1028
  %1341 = vst [vmem:[%s7 + $0x60] sm:$0xff] %v1043
  %1342 = vst [vmem:[%s7 + $0x68] sm:$0xff] %v1058
  %1343 = vst [vmem:[%s7 + $0x70] sm:$0xff] %v1073
  %1344 = vst [vmem:[%s7 + $0x78] sm:$0xff] %v1088
  %1345 = vst [vmem:[%s7 + $0x80] sm:$0xff] %v1103
  %1346 = vst [vmem:[%s7 + $0x88] sm:$0xff] %v1118
  %1347 = vst [vmem:[%s7 + $0x90] sm:$0xff] %v1133
  %1348 = vst [vmem:[%s7 + $0x98] sm:$0xff] %v1148
  %1349 = vst [vmem:[%s7 + $0xa0] sm:$0xff] %v1163
  %1350 = vst [vmem:[%s7 + $0xa8] sm:$0xff] %v1178
  %1351 = vst [vmem:[%s7 + $0xb0] sm:$0xff] %v1193
  %1352 = vst [vmem:[%s7 + $0xb8] sm:$0xff] %v1208
  %1353 = vst [vmem:[%s7 + $0xc0] sm:$0xff] %v1223
  %1354 = vst [vmem:[%s7 + $0xc8] sm:$0xff] %v1238
  %1355 = vst [vmem:[%s7 + $0xd0] sm:$0xff] %v1253
  %1356 = vst [vmem:[%s7 + $0xd8] sm:$0xff] %v1268
  %1357 = vst [vmem:[%s7 + $0xe0] sm:$0xff] %v1283
  %1358 = vst [vmem:[%s7 + $0xe8] sm:$0xff] %v1298
  %1359 = vst [vmem:[%s7 + $0xf0] sm:$0xff] %v1313
  %1360 = vst [vmem:[%s7 + $0xf8] sm:$0xff] %v1328
  // Predicated region
  $region30: #{matrix_nn_forward.1} parent=0 // pred_check
    _
  $region31: #{matrix_nn_forward.1} parent=0 // pred_check_branch
    %1362 = sbr.rel (0) target = $region33
  $region32: #{matrix_nn_forward.1} parent=0 // pred_region
    _
  $region33: #{matrix_nn_forward.1} parent=0 // pred_fallthru
    _
  // Predicated region
  $region34: #{matrix_nn_forward.1} parent=0 // pred_check
    _
  $region35: #{matrix_nn_forward.1} parent=0 // pred_check_branch
    %1364 = sbr.rel (0) target = $region37
  $region36: #{matrix_nn_forward.1} parent=0 // pred_region
    _
  $region37: #{matrix_nn_forward.1} parent=0 // pred_fallthru
    _

</llo_original>
